<compile_context>
chip_gen: v7x
topology: tpu7x:2x2x1
jax: 0.10.0
libtpu: 0.0.40
codegen_flags: <defaults>
</compile_context>

<pallas_src>
import functools
import math

import jax
import jax.numpy as jnp
from jax import lax
from jax.experimental import pallas as pl
from jax.experimental.pallas import tpu as pltpu


# ---------------------------------------------------------------------------
# Kernel 1: row-wise L2 normalize (F.normalize eps=1e-12 semantics) with
# sqrt(1/temperature) folded in, emitted in the MXU operand dtype.
# ---------------------------------------------------------------------------
def _l2norm_scale_kernel(x_ref, o_ref, *, scale):
    x = x_ref[...].astype(jnp.float32)
    s = jnp.sum(x * x, axis=-1, keepdims=True)
    inv = lax.rsqrt(jnp.maximum(s, 1e-24)) * scale        # rsqrt -> EUP slot
    o_ref[...] = (x * inv).astype(o_ref.dtype)


# ---------------------------------------------------------------------------
# Kernel 2: flash-style tiled InfoNCE with a single shared online max.
# ---------------------------------------------------------------------------
def _infonce_kernel(tcol_ref, trow_ref, q_ref, k_ref, out_ref,
                    m_acc, lpos_acc, lneg_acc,
                    *, block_m, block_k, n_valid, mask_cols, keys_resident):
    i = pl.program_id(0)          # query-row tile ("parallel")
    j = pl.program_id(1)          # key tile (reduction axis, last, "arbitrary")

    @pl.when(j == 0)
    def _():
        # Shared running max starts at 0: the true row max is >= 0 because the
        # diagonal logit is exactly 0 (added at finalize); the shared max
        # cancels in lse_pos - lse_neg anyway.
        m_acc[...] = jnp.zeros(m_acc.shape, jnp.float32)
        lpos_acc[...] = jnp.zeros(lpos_acc.shape, jnp.float32)
        lneg_acc[...] = jnp.zeros(lneg_acc.shape, jnp.float32)

    if keys_resident:
        start = pl.multiple_of(j * block_k, block_k)
        k_tile = k_ref[pl.ds(start, block_k), :]
    else:
        k_tile = k_ref[...]

    # Similarity tile on the MXU; 1/temperature is already folded into both
    # operands by kernel 1, operands stay in the MXU dtype, f32 accumulation.
    sim = lax.dot_general(
        q_ref[...], k_tile,
        dimension_numbers=(((1,), (1,)), ((), ())),
        preferred_element_type=jnp.float32,
    )                                                      # (block_m, block_k)

    # Boolean masks only.  ~label_eq already excludes the diagonal from the
    # negatives; the positives additionally drop the diagonal, whose exact-0
    # logit is re-added at finalize.
    label_eq = tcol_ref[...] == trow_ref[...]              # (bm,1)==(1,bk)->(bm,bk)
    riota = lax.broadcasted_iota(jnp.int32, sim.shape, 0)
    ciota = lax.broadcasted_iota(jnp.int32, sim.shape, 1)
    pos_mask = label_eq & ((riota + (i * block_m - j * block_k)) != ciota)
    neg_mask = jnp.logical_not(label_eq)

    if mask_cols:
        # Zero-padded key columns: excluded from both sums — identical to the
        # reference where exp(-1000 - max) underflows to exactly 0.
        col_valid = (ciota + j * block_k) < n_valid
        pos_mask = pos_mask & col_valid
        neg_mask = neg_mask & col_valid

    m_prev = m_acc[...]
    m_new = jnp.maximum(m_prev, jnp.max(sim, axis=-1, keepdims=True))
    alpha = jnp.exp(m_prev - m_new)
    e = jnp.exp(sim - m_new)                               # single EUP exp/tile
    zero = jnp.zeros_like(e)
    lpos_acc[...] = lpos_acc[...] * alpha + jnp.sum(
        jnp.where(pos_mask, e, zero), axis=-1, keepdims=True)
    lneg_acc[...] = lneg_acc[...] * alpha + jnp.sum(
        jnp.where(neg_mask, e, zero), axis=-1, keepdims=True)
    m_acc[...] = m_new

    @pl.when(j == pl.num_programs(1) - 1)
    def _():
        # Diagonal contributes exp(0 - m) to BOTH logsumexps; the shared max m
        # cancels, so the result is just log(l_pos) - log(l_neg).
        # (Assumes exp(-m) does not underflow, i.e. 1/temperature < ~80 —
        #  true for any practical temperature.)
        diag = jnp.exp(-m_acc[...])
        out_ref[...] = (jnp.log(lpos_acc[...] + diag)
                        - jnp.log(lneg_acc[...] + diag))


# ---------------------------------------------------------------------------
# Wrapper
# ---------------------------------------------------------------------------
def supervised_infonce(features, target, temperature=0.07, *,
                       block_m=256, block_k=256,
                       mxu_dtype=jnp.bfloat16,
                       key_resident_budget_bytes=12 * 1024 * 1024):
    """SupervisedInfoNCE forward.  features: [N, D], target: [N] int labels -> scalar f32."""
    assert block_m % 8 == 0 and block_k % 128 == 0
    n, d = features.shape
    if mxu_dtype is None:
        mxu_dtype = features.dtype
    esize = jnp.dtype(mxu_dtype).itemsize

    tile = (block_m * block_k) // math.gcd(block_m, block_k)
    n_pad = ((n + tile - 1) // tile) * tile

    feats = features
    tgt = target.astype(jnp.int32)
    if n_pad != n:
        feats = jnp.pad(feats, ((0, n_pad - n), (0, 0)))
        tgt = jnp.pad(tgt, (0, n_pad - n))

    def vmem_limit(nbytes):
        # Raise the scoped-VMEM cap when needed (v5e default is only 16 MiB),
        # but stay under the smallest physical VMEM (64 MiB on v7x).
        return int(min(max(2 * nbytes, 32 * 1024 * 1024), 56 * 1024 * 1024))

    # ---- kernel 1: normalize once, fold sqrt(1/temperature), emit MXU dtype --
    scale = float(1.0 / temperature) ** 0.5
    norm_bytes = 2 * block_m * d * (features.dtype.itemsize + esize)
    x_norm = pl.pallas_call(
        functools.partial(_l2norm_scale_kernel, scale=scale),
        out_shape=jax.ShapeDtypeStruct((n_pad, d), mxu_dtype),
        grid_spec=pltpu.PrefetchScalarGridSpec(
            num_scalar_prefetch=0,
            grid=(n_pad // block_m,),
            in_specs=[pl.BlockSpec((block_m, d), lambda r: (r, 0))],
            out_specs=pl.BlockSpec((block_m, d), lambda r: (r, 0)),
        ),
        compiler_params=pltpu.CompilerParams(
            dimension_semantics=("parallel",),
            vmem_limit_bytes=vmem_limit(norm_bytes)),
    )(feats)

    t_col = tgt.reshape(n_pad, 1)       # query-tile labels (tiny column)
    t_row = tgt.reshape(1, n_pad)       # lane-dense key-tile labels

    # Keep the whole normalized key matrix resident in VMEM when small enough:
    # it is DMA'd once and reused by every row tile instead of being
    # re-streamed N/block_m times from HBM.
    keys_resident = (n_pad * d * esize) <= key_resident_budget_bytes
    if keys_resident:
        k_spec = pl.BlockSpec((n_pad, d), lambda i, j: (0, 0))
        key_bytes = n_pad * d * esize
    else:
        k_spec = pl.BlockSpec((block_k, d), lambda i, j: (j, 0))
        key_bytes = block_k * d * esize

    kernel = functools.partial(
        _infonce_kernel,
        block_m=block_m, block_k=block_k,
        n_valid=n, mask_cols=(n_pad != n),
        keys_resident=keys_resident)

    body_bytes = (2 * (block_m * d * esize + key_bytes)
                  + 16 * block_m * 4 + 4 * block_m * block_k)
    per_example = pl.pallas_call(
        kernel,
        out_shape=jax.ShapeDtypeStruct((n_pad, 1), jnp.float32),
        grid_spec=pltpu.PrefetchScalarGridSpec(
            num_scalar_prefetch=0,
            grid=(n_pad // block_m, n_pad // block_k),
            in_specs=[
                pl.BlockSpec((block_m, 1), lambda i, j: (i, 0)),   # row labels
                pl.BlockSpec((1, block_k), lambda i, j: (0, j)),   # col labels
                pl.BlockSpec((block_m, d), lambda i, j: (i, 0)),   # queries
                k_spec,                                            # keys
            ],
            out_specs=pl.BlockSpec((block_m, 1), lambda i, j: (i, 0)),
            scratch_shapes=[pltpu.VMEM((block_m, 1), jnp.float32)] * 3,
        ),
        compiler_params=pltpu.CompilerParams(
            dimension_semantics=("parallel", "arbitrary"),
            vmem_limit_bytes=vmem_limit(body_bytes)),
    )(t_col, t_row, x_norm, x_norm)

    return -jnp.mean(per_example[:n, 0])


# ---------------------------------------------------------------------------
# Pure-JAX references
# ---------------------------------------------------------------------------
def _mask_logsumexp_loss(sim, target):
    mask = (target[:, None] == target[None, :]).astype(jnp.float32)
    eye = jnp.eye(mask.shape[0], dtype=jnp.float32)
    pos_mask = mask - eye
    neg_mask = 1.0 - mask
    lse_pos = jax.scipy.special.logsumexp(sim * pos_mask + neg_mask * -1000.0, axis=-1)
    lse_neg = jax.scipy.special.logsumexp(sim * neg_mask + pos_mask * -1000.0, axis=-1)
    return -jnp.mean(lse_pos - lse_neg)


def _reference_infonce(features, target, temperature=0.07):
    # Literal f32 port of the PyTorch forward.
    x = features.astype(jnp.float32)
    x = x / jnp.maximum(jnp.linalg.norm(x, axis=-1, keepdims=True), 1e-12)
    sim = jnp.dot(x, x.T, precision=lax.Precision.HIGHEST) / temperature
    return _mask_logsumexp_loss(sim, target)


def _matched_reference(features, target, temperature=0.07, operand_dtype=jnp.bfloat16):
    # Same math, mirroring the kernel's rounding of the MXU operands.
    x = features.astype(jnp.float32)
    inv = lax.rsqrt(jnp.maximum(jnp.sum(x * x, axis=-1, keepdims=True), 1e-24))
    x = (x * (inv * (1.0 / temperature) ** 0.5)).astype(operand_dtype).astype(jnp.float32)
    sim = jnp.dot(x, x.T, precision=lax.Precision.HIGHEST)
    return _mask_logsumexp_loss(sim, target)


if __name__ == "__main__":
    key = jax.random.PRNGKey(0)
    kf, kt = jax.random.split(key)

    # N=300 is not a tile multiple (pads to 512 -> 2x2 grid, partially-valid
    # last key tile), D=64 features, 5 classes.
    N, D, C = 300, 64, 5
    features = jax.random.normal(kf, (N, D), dtype=jnp.float32)
    target = jax.random.randint(kt, (N,), 0, C, dtype=jnp.int32)

    ref_f32 = _reference_infonce(features, target, temperature=0.07)
    ref_bf16 = _matched_reference(features, target, temperature=0.07)

    # Default path: bf16 MXU operands, keys fully resident in VMEM.
    loss = jax.block_until_ready(
        supervised_infonce(features, target, temperature=0.07))
    assert bool(jnp.isfinite(loss)), loss
    assert jnp.allclose(loss, ref_bf16, atol=5e-3, rtol=5e-3), (loss, ref_bf16)
    assert jnp.allclose(loss, ref_f32, atol=3e-2, rtol=3e-2), (loss, ref_f32)

    # Streamed-keys path (per-tile key DMA from HBM), same numerics.
    loss_stream = jax.block_until_ready(
        supervised_infonce(features, target, temperature=0.07,
                           key_resident_budget_bytes=0))
    assert jnp.allclose(loss_stream, ref_bf16, atol=5e-3, rtol=5e-3), (loss_stream, ref_bf16)

    print("KERNEL_OK")
</pallas_src>

<mosaic_0001>
module attributes {stable_mosaic.version = 11 : i64} {
  func.func @_l2norm_scale_kernel(%arg0: i32, %arg1: memref<256x64xf32, #tpu.memory_space<vmem>>, %arg2: memref<256x64xbf16, #tpu.memory_space<vmem>>) attributes {dimension_semantics = [#tpu.dimension_semantics<parallel>], iteration_bounds = array<i64: 2>, scalar_prefetch = 0 : i64, scratch_operands = 0 : i64, tpu.core_type = #tpu.core_type<tc>, window_params = [{transform_indices = @transform_0, window_bounds = array<i64: 256, 64>}, {transform_indices = @transform_1, window_bounds = array<i64: 256, 64>}]} {
    %c0 = arith.constant 0 : index
    %c0_0 = arith.constant 0 : index
    %0 = vector.load %arg1[%c0, %c0_0] : memref<256x64xf32, #tpu.memory_space<vmem>>, vector<256x64xf32>
    %1 = arith.mulf %0, %0 : vector<256x64xf32>
    %cst = arith.constant dense<0.000000e+00> : vector<256xf32>
    %2 = vector.multi_reduction <add>, %1, %cst [1] : vector<256x64xf32> to vector<256xf32>
    %3 = vector.shape_cast %2 : vector<256xf32> to vector<256x1xf32>
    %cst_1 = arith.constant 1.000000e-24 : f32
    %4 = vector.broadcast %cst_1 : f32 to vector<256x1xf32>
    %5 = arith.maximumf %3, %4 : vector<256x1xf32>
    %6 = math.rsqrt %5 : vector<256x1xf32>
    %cst_2 = arith.constant 3.77964473 : f32
    %7 = vector.broadcast %cst_2 : f32 to vector<256x1xf32>
    %8 = arith.mulf %6, %7 : vector<256x1xf32>
    %9 = vector.broadcast %8 : vector<256x1xf32> to vector<256x64xf32>
    %10 = arith.mulf %0, %9 : vector<256x64xf32>
    %11 = arith.truncf %10 : vector<256x64xf32> to vector<256x64xbf16>
    %c0_3 = arith.constant 0 : index
    %c0_4 = arith.constant 0 : index
    %12 = vector.load %arg2[%c0_3, %c0_4] : memref<256x64xbf16, #tpu.memory_space<vmem>>, vector<256x64xbf16>
    tpu.vector_store %arg2[%c0_3, %c0_4], %11 {strides = array<i32>} : memref<256x64xbf16, #tpu.memory_space<vmem>>, vector<256x64xbf16>,
    return
  }
  func.func @transform_0(%arg0: i32) -> (i32, i32) {
    %c0_i32 = arith.constant 0 : i32
    %c0_i32_0 = arith.constant 0 : i32
    return %arg0, %c0_i32 : i32, i32
  }
  func.func @transform_1(%arg0: i32) -> (i32, i32) {
    %c0_i32 = arith.constant 0 : i32
    %c0_i32_0 = arith.constant 0 : i32
    return %arg0, %c0_i32 : i32, i32
  }
}

</mosaic_0001>

<llo_original>
// kernel: tpu_custom_call.1
$region0: #{tpu_custom_call.1}
  #allocation0 [shape = 'u32[]', space=smem, size = 0x4, offset = 0x4, fixed_abs, tag = 'smem constant byte address 0x4 - core index']
  #allocation1 [shape = 'u32[144,128]{1,0:T(1,128)}', space=vmem, size = 0x12000, scoped, tag = 'internal scratch']
  %s0 = inlined_call_operand.vmem [shape: f32[512,64], index: 0, kind: input, shape index: {}]
  %s1 = inlined_call_operand.vmem [shape: bf16[512,64], index: 1, kind: output, shape index: {}]
  %s2 = sld [smem:[#allocation0]]
  $region37: #{tpu_custom_call.1} parent=0
    _
  %s4 = ssub.s32 1, %s2
  %s5 = scalar_select 0, %s4, %s2
  loop: start=0, step=1, limit=4
  $region2: #{tpu_custom_call.1} parent=0 // loop_pre_header
    _
  $region3: #{tpu_custom_call.1} parent=0 // loop_header
    %s7 = sphi 0, %s11
    %p8 = scmp.ge.s32.totalorder %s7, 4
    %s17 = sphi 0, %s19
    %s20 = sphi 0, %s17
    %s21 = sphi 0, %s20
    %s37 = sphi 0, %s21
    %s43 = sphi 0, %s45
    %s46 = sphi 0, %s43
    %s47 = sphi 0, %s46
    %s63 = sphi 0, %s47
  $region4: #{tpu_custom_call.1} parent=0 // loop_header_branch
    %10 = sbr.rel (%p8) target = $region8
  $region5: #{tpu_custom_call.1} parent=0 // loop_body
    %s12 = ssub.s32 %s7, 1
    %s13 = ssub.s32 %s7, 2
    %s14 = sadd.s32 %s7, 1
    %s15 = ssub.s32 %s7, %s14
    %p16 = scmp.eq.s32.totalorder %s15, 0
    %s18 = sadd.s32 %s17, 1
    %s19 = scalar_select %p16, %s17, %s18
    %p22 = pneg %p16
    %p23 = scmp.eq.s32.totalorder %s7, 1
    %p24 = por %p22, %p23
    %p25 = scmp.ne.s32.totalorder %s17, %s20
    %p26 = scmp.eq.s32.totalorder %s7, 0
    %p27 = por %p25, %p26
    %p28 = scmp.ne.s32.totalorder %s17, %s20
    %p29 = scmp.eq.s32.totalorder %s12, 1
    %p30 = por %p28, %p29
    %p31 = scmp.ne.s32.totalorder %s20, %s21
    %p32 = scmp.eq.s32.totalorder %s12, 0
    %p33 = por %p31, %p32
    %p34 = scmp.ne.s32.totalorder %s20, %s21
    %p35 = scmp.eq.s32.totalorder %s13, 1
    %p36 = por %p34, %p35
    %p38 = scmp.ne.s32.totalorder %s21, %s37
    %p39 = scmp.eq.s32.totalorder %s13, 0
    %p40 = por %p38, %p39
    %s41 = ssub.s32 %s7, %s14
    %p42 = scmp.eq.s32.totalorder %s41, 0
    %s44 = sadd.s32 %s43, 1
    %s45 = scalar_select %p42, %s43, %s44
    %p48 = pneg %p42
    %p49 = scmp.eq.s32.totalorder %s7, 1
    %p50 = por %p48, %p49
    %p51 = scmp.ne.s32.totalorder %s43, %s46
    %p52 = scmp.eq.s32.totalorder %s7, 0
    %p53 = por %p51, %p52
    %p54 = scmp.ne.s32.totalorder %s43, %s46
    %p55 = scmp.eq.s32.totalorder %s12, 1
    %p56 = por %p54, %p55
    %p57 = scmp.ne.s32.totalorder %s46, %s47
    %p58 = scmp.eq.s32.totalorder %s12, 0
    %p59 = por %p57, %p58
    %p60 = scmp.ne.s32.totalorder %s46, %s47
    %p61 = scmp.eq.s32.totalorder %s13, 1
    %p62 = por %p60, %p61
    %p64 = scmp.ne.s32.totalorder %s47, %s63
    %p65 = scmp.eq.s32.totalorder %s13, 0
    %p66 = por %p64, %p65
    %p67 = scmp.le.s32.totalorder 1, %s7
    %p68 = scmp.lt.s32.totalorder %s7, 3
    %p69 = pnand %p67, %p68
    %p70 = pneg %p69
    // Predicated region
    $region9: #{tpu_custom_call.1} parent=5 // pred_check
      _
    $region10: #{tpu_custom_call.1} parent=5 // pred_check_branch
      %72 = sbr.rel (%p69) target = $region12
    $region11: #{tpu_custom_call.1} parent=5 // pred_region
      %s73 = ssub.s32 %s7, 1
    $region12: #{tpu_custom_call.1} parent=5 // pred_fallthru
      _
    %p74 = scmp.lt.s32.totalorder %s7, 2
    // Predicated region
    $region13: #{tpu_custom_call.1} parent=5 // pred_check
      %p75 = pneg %p74
    $region14: #{tpu_custom_call.1} parent=5 // pred_check_branch
      %77 = sbr.rel (%p75) target = $region16
    $region15: #{tpu_custom_call.1} parent=5 // pred_region
      // Predicated region
      $region17: #{tpu_custom_call.1} parent=15 // pred_check
        %p78 = pneg %p27
      $region18: #{tpu_custom_call.1} parent=15 // pred_check_branch
        %80 = sbr.rel (%p78) target = $region20
      $region19: #{tpu_custom_call.1} parent=15 // pred_region
        %s81 = smul.u32 32, %s7
        %p82 = scmp.lt.s32.totalorder %s81, 63
        %s83 = scalar_select %p82, %s81, 63
        %s84 = smul.addr %s83, 8
        %s85 = scalar_lea.vmem %s0, %s84
        %s86 = smul.u32 32, %s7
      $region20: #{tpu_custom_call.1} parent=15 // pred_fallthru
        _
    $region16: #{tpu_custom_call.1} parent=5 // pred_fallthru
      _
    %p87 = scmp.le.s32.totalorder 1, %s7
    %p88 = scmp.lt.s32.totalorder %s7, 3
    %p89 = pnand %p87, %p88
    %p90 = pneg %p89
    // Predicated region
    $region21: #{tpu_custom_call.1} parent=5 // pred_check
      _
    $region22: #{tpu_custom_call.1} parent=5 // pred_check_branch
      %92 = sbr.rel (%p89) target = $region24
    $region23: #{tpu_custom_call.1} parent=5 // pred_region
      %s93 = ssub.s32 %s7, 1
      %s94 = smul.u32 32, %s12
      %p95 = scmp.lt.s32.totalorder %s94, 63
      %s96 = scalar_select %p95, %s94, 63
      %s97 = smul.addr %s96, 8
      %s98 = scalar_lea.vmem %s0, %s97
      %p99 = pneg %p33
      %p100 = pneg %p30
      %p101 = pneg %p59
      %p102 = pneg %p56
      %s103 = smul.u32 32, %s12
      %p104 = scmp.lt.s32.totalorder %s103, 63
      %s105 = scalar_select %p104, %s103, 63
      %s106 = smul.addr %s105, 4
      %s107 = scalar_lea.vmem %s1, %s106
      %s108 = smul.u32 32, %s12
      %p109 = scmp.lt.s32.totalorder %s108, 63
      %s110 = scalar_select %p109, %s108, 63
      %s111 = smul.addr %s110, 8
      %s112 = scalar_lea.vmem %s0, %s111
      %s113 = smul.u32 32, %s12
      %s114 = smul.u32 32, %s12
      %p115 = scmp.lt.s32.totalorder %s114, 63
      %s116 = scalar_select %p115, %s114, 63
      %s117 = smul.addr %s116, 4
      %s118 = scalar_lea.vmem %s1, %s117
      %s119 = smul.u32 32, %s12
      %v120 = vld [vmem:[%s112] sm:$0xff]
      %v121 = vld [vmem:[%s112 + $0x8] sm:$0xff]
      %v122 = vld [vmem:[%s112 + $0x10] sm:$0xff]
      %v123 = vld [vmem:[%s112 + $0x18] sm:$0xff]
      %v124 = vld [vmem:[%s112 + $0x20] sm:$0xff]
      %v125 = vld [vmem:[%s112 + $0x28] sm:$0xff]
      %v126 = vld [vmem:[%s112 + $0x30] sm:$0xff]
      %v127 = vld [vmem:[%s112 + $0x38] sm:$0xff]
      %v128 = vld [vmem:[%s112 + $0x40] sm:$0xff]
      %v129 = vld [vmem:[%s112 + $0x48] sm:$0xff]
      %v130 = vld [vmem:[%s112 + $0x50] sm:$0xff]
      %v131 = vld [vmem:[%s112 + $0x58] sm:$0xff]
      %v132 = vld [vmem:[%s112 + $0x60] sm:$0xff]
      %v133 = vld [vmem:[%s112 + $0x68] sm:$0xff]
      %v134 = vld [vmem:[%s112 + $0x70] sm:$0xff]
      %v135 = vld [vmem:[%s112 + $0x78] sm:$0xff]
      %v136 = vld [vmem:[%s112 + $0x80] sm:$0xff]
      %v137 = vld [vmem:[%s112 + $0x88] sm:$0xff]
      %v138 = vld [vmem:[%s112 + $0x90] sm:$0xff]
      %v139 = vld [vmem:[%s112 + $0x98] sm:$0xff]
      %v140 = vld [vmem:[%s112 + $0xa0] sm:$0xff]
      %v141 = vld [vmem:[%s112 + $0xa8] sm:$0xff]
      %v142 = vld [vmem:[%s112 + $0xb0] sm:$0xff]
      %v143 = vld [vmem:[%s112 + $0xb8] sm:$0xff]
      %v144 = vld [vmem:[%s112 + $0xc0] sm:$0xff]
      %v145 = vld [vmem:[%s112 + $0xc8] sm:$0xff]
      %v146 = vld [vmem:[%s112 + $0xd0] sm:$0xff]
      %v147 = vld [vmem:[%s112 + $0xd8] sm:$0xff]
      %v148 = vld [vmem:[%s112 + $0xe0] sm:$0xff]
      %v149 = vld [vmem:[%s112 + $0xe8] sm:$0xff]
      %v150 = vld [vmem:[%s112 + $0xf0] sm:$0xff]
      %v151 = vld [vmem:[%s112 + $0xf8] sm:$0xff]
      %v152 = vmul.f32 %v120, %v120
      %v153 = vmul.f32 %v121, %v121
      %v154 = vmul.f32 %v122, %v122
      %v155 = vmul.f32 %v123, %v123
      %v156 = vmul.f32 %v124, %v124
      %v157 = vmul.f32 %v125, %v125
      %v158 = vmul.f32 %v126, %v126
      %v159 = vmul.f32 %v127, %v127
      %v160 = vmul.f32 %v128, %v128
      %v161 = vmul.f32 %v129, %v129
      %v162 = vmul.f32 %v130, %v130
      %v163 = vmul.f32 %v131, %v131
      %v164 = vmul.f32 %v132, %v132
      %v165 = vmul.f32 %v133, %v133
      %v166 = vmul.f32 %v134, %v134
      %v167 = vmul.f32 %v135, %v135
      %v168 = vmul.f32 %v136, %v136
      %v169 = vmul.f32 %v137, %v137
      %v170 = vmul.f32 %v138, %v138
      %v171 = vmul.f32 %v139, %v139
      %v172 = vmul.f32 %v140, %v140
      %v173 = vmul.f32 %v141, %v141
      %v174 = vmul.f32 %v142, %v142
      %v175 = vmul.f32 %v143, %v143
      %v176 = vmul.f32 %v144, %v144
      %v177 = vmul.f32 %v145, %v145
      %v178 = vmul.f32 %v146, %v146
      %v179 = vmul.f32 %v147, %v147
      %v180 = vmul.f32 %v148, %v148
      %v181 = vmul.f32 %v149, %v149
      %v182 = vmul.f32 %v150, %v150
      %v183 = vmul.f32 %v151, %v151
      %vm184 = vcmask 523264
      %v185 = vsel %vm184, %v152, 0.0
      %186 = vadd.xlane.f32.xlu0 %v185
      %v187 = vpop.xlane.xlu0 %186
      %v188 = vsel %vm184, %v153, 0.0
      %189 = vadd.xlane.f32.xlu0 %v188
      %v190 = vpop.xlane.xlu0 %189
      %v191 = vsel %vm184, %v154, 0.0
      %192 = vadd.xlane.f32.xlu0 %v191
      %v193 = vpop.xlane.xlu0 %192
      %v194 = vsel %vm184, %v155, 0.0
      %195 = vadd.xlane.f32.xlu0 %v194
      %v196 = vpop.xlane.xlu0 %195
      %v197 = vsel %vm184, %v156, 0.0
      %198 = vadd.xlane.f32.xlu0 %v197
      %v199 = vpop.xlane.xlu0 %198
      %v200 = vsel %vm184, %v157, 0.0
      %201 = vadd.xlane.f32.xlu0 %v200
      %v202 = vpop.xlane.xlu0 %201
      %v203 = vsel %vm184, %v158, 0.0
      %204 = vadd.xlane.f32.xlu0 %v203
      %v205 = vpop.xlane.xlu0 %204
      %v206 = vsel %vm184, %v159, 0.0
      %207 = vadd.xlane.f32.xlu0 %v206
      %v208 = vpop.xlane.xlu0 %207
      %v209 = vsel %vm184, %v160, 0.0
      %210 = vadd.xlane.f32.xlu0 %v209
      %v211 = vpop.xlane.xlu0 %210
      %v212 = vsel %vm184, %v161, 0.0
      %213 = vadd.xlane.f32.xlu0 %v212
      %v214 = vpop.xlane.xlu0 %213
      %v215 = vsel %vm184, %v162, 0.0
      %216 = vadd.xlane.f32.xlu0 %v215
      %v217 = vpop.xlane.xlu0 %216
      %v218 = vsel %vm184, %v163, 0.0
      %219 = vadd.xlane.f32.xlu0 %v218
      %v220 = vpop.xlane.xlu0 %219
      %v221 = vsel %vm184, %v164, 0.0
      %222 = vadd.xlane.f32.xlu0 %v221
      %v223 = vpop.xlane.xlu0 %222
      %v224 = vsel %vm184, %v165, 0.0
      %225 = vadd.xlane.f32.xlu0 %v224
      %v226 = vpop.xlane.xlu0 %225
      %v227 = vsel %vm184, %v166, 0.0
      %228 = vadd.xlane.f32.xlu0 %v227
      %v229 = vpop.xlane.xlu0 %228
      %v230 = vsel %vm184, %v167, 0.0
      %231 = vadd.xlane.f32.xlu0 %v230
      %v232 = vpop.xlane.xlu0 %231
      %v233 = vsel %vm184, %v168, 0.0
      %234 = vadd.xlane.f32.xlu0 %v233
      %v235 = vpop.xlane.xlu0 %234
      %v236 = vsel %vm184, %v169, 0.0
      %237 = vadd.xlane.f32.xlu0 %v236
      %v238 = vpop.xlane.xlu0 %237
      %v239 = vsel %vm184, %v170, 0.0
      %240 = vadd.xlane.f32.xlu0 %v239
      %v241 = vpop.xlane.xlu0 %240
      %v242 = vsel %vm184, %v171, 0.0
      %243 = vadd.xlane.f32.xlu0 %v242
      %v244 = vpop.xlane.xlu0 %243
      %v245 = vsel %vm184, %v172, 0.0
      %246 = vadd.xlane.f32.xlu0 %v245
      %v247 = vpop.xlane.xlu0 %246
      %v248 = vsel %vm184, %v173, 0.0
      %249 = vadd.xlane.f32.xlu0 %v248
      %v250 = vpop.xlane.xlu0 %249
      %v251 = vsel %vm184, %v174, 0.0
      %252 = vadd.xlane.f32.xlu0 %v251
      %v253 = vpop.xlane.xlu0 %252
      %v254 = vsel %vm184, %v175, 0.0
      %255 = vadd.xlane.f32.xlu0 %v254
      %v256 = vpop.xlane.xlu0 %255
      %v257 = vsel %vm184, %v176, 0.0
      %258 = vadd.xlane.f32.xlu0 %v257
      %v259 = vpop.xlane.xlu0 %258
      %v260 = vsel %vm184, %v177, 0.0
      %261 = vadd.xlane.f32.xlu0 %v260
      %v262 = vpop.xlane.xlu0 %261
      %v263 = vsel %vm184, %v178, 0.0
      %264 = vadd.xlane.f32.xlu0 %v263
      %v265 = vpop.xlane.xlu0 %264
      %v266 = vsel %vm184, %v179, 0.0
      %267 = vadd.xlane.f32.xlu0 %v266
      %v268 = vpop.xlane.xlu0 %267
      %v269 = vsel %vm184, %v180, 0.0
      %270 = vadd.xlane.f32.xlu0 %v269
      %v271 = vpop.xlane.xlu0 %270
      %v272 = vsel %vm184, %v181, 0.0
      %273 = vadd.xlane.f32.xlu0 %v272
      %v274 = vpop.xlane.xlu0 %273
      %v275 = vsel %vm184, %v182, 0.0
      %276 = vadd.xlane.f32.xlu0 %v275
      %v277 = vpop.xlane.xlu0 %276
      %v278 = vsel %vm184, %v183, 0.0
      %279 = vadd.xlane.f32.xlu0 %v278
      %v280 = vpop.xlane.xlu0 %279
      %v281 = vmax.f32 %v187, 1e-24
      %v282 = vmax.f32 %v190, 1e-24
      %v283 = vmax.f32 %v193, 1e-24
      %v284 = vmax.f32 %v196, 1e-24
      %v285 = vmax.f32 %v199, 1e-24
      %v286 = vmax.f32 %v202, 1e-24
      %v287 = vmax.f32 %v205, 1e-24
      %v288 = vmax.f32 %v208, 1e-24
      %v289 = vmax.f32 %v211, 1e-24
      %v290 = vmax.f32 %v214, 1e-24
      %v291 = vmax.f32 %v217, 1e-24
      %v292 = vmax.f32 %v220, 1e-24
      %v293 = vmax.f32 %v223, 1e-24
      %v294 = vmax.f32 %v226, 1e-24
      %v295 = vmax.f32 %v229, 1e-24
      %v296 = vmax.f32 %v232, 1e-24
      %v297 = vmax.f32 %v235, 1e-24
      %v298 = vmax.f32 %v238, 1e-24
      %v299 = vmax.f32 %v241, 1e-24
      %v300 = vmax.f32 %v244, 1e-24
      %v301 = vmax.f32 %v247, 1e-24
      %v302 = vmax.f32 %v250, 1e-24
      %v303 = vmax.f32 %v253, 1e-24
      %v304 = vmax.f32 %v256, 1e-24
      %v305 = vmax.f32 %v259, 1e-24
      %v306 = vmax.f32 %v262, 1e-24
      %v307 = vmax.f32 %v265, 1e-24
      %v308 = vmax.f32 %v268, 1e-24
      %v309 = vmax.f32 %v271, 1e-24
      %v310 = vmax.f32 %v274, 1e-24
      %v311 = vmax.f32 %v277, 1e-24
      %v312 = vmax.f32 %v280, 1e-24
      %v313 = vrsqrt.pop %v281
      %v314 = vrsqrt.pop %v282
      %v315 = vrsqrt.pop %v283
      %v316 = vrsqrt.pop %v284
      %v317 = vrsqrt.pop %v285
      %v318 = vrsqrt.pop %v286
      %v319 = vrsqrt.pop %v287
      %v320 = vrsqrt.pop %v288
      %v321 = vrsqrt.pop %v289
      %v322 = vrsqrt.pop %v290
      %v323 = vrsqrt.pop %v291
      %v324 = vrsqrt.pop %v292
      %v325 = vrsqrt.pop %v293
      %v326 = vrsqrt.pop %v294
      %v327 = vrsqrt.pop %v295
      %v328 = vrsqrt.pop %v296
      %v329 = vrsqrt.pop %v297
      %v330 = vrsqrt.pop %v298
      %v331 = vrsqrt.pop %v299
      %v332 = vrsqrt.pop %v300
      %v333 = vrsqrt.pop %v301
      %v334 = vrsqrt.pop %v302
      %v335 = vrsqrt.pop %v303
      %v336 = vrsqrt.pop %v304
      %v337 = vrsqrt.pop %v305
      %v338 = vrsqrt.pop %v306
      %v339 = vrsqrt.pop %v307
      %v340 = vrsqrt.pop %v308
      %v341 = vrsqrt.pop %v309
      %v342 = vrsqrt.pop %v310
      %v343 = vrsqrt.pop %v311
      %v344 = vrsqrt.pop %v312
      %v345 = vmul.f32 %v313, 3.7796447
      %v346 = vmul.f32 %v314, 3.7796447
      %v347 = vmul.f32 %v315, 3.7796447
      %v348 = vmul.f32 %v316, 3.7796447
      %v349 = vmul.f32 %v317, 3.7796447
      %v350 = vmul.f32 %v318, 3.7796447
      %v351 = vmul.f32 %v319, 3.7796447
      %v352 = vmul.f32 %v320, 3.7796447
      %v353 = vmul.f32 %v321, 3.7796447
      %v354 = vmul.f32 %v322, 3.7796447
      %v355 = vmul.f32 %v323, 3.7796447
      %v356 = vmul.f32 %v324, 3.7796447
      %v357 = vmul.f32 %v325, 3.7796447
      %v358 = vmul.f32 %v326, 3.7796447
      %v359 = vmul.f32 %v327, 3.7796447
      %v360 = vmul.f32 %v328, 3.7796447
      %v361 = vmul.f32 %v329, 3.7796447
      %v362 = vmul.f32 %v330, 3.7796447
      %v363 = vmul.f32 %v331, 3.7796447
      %v364 = vmul.f32 %v332, 3.7796447
      %v365 = vmul.f32 %v333, 3.7796447
      %v366 = vmul.f32 %v334, 3.7796447
      %v367 = vmul.f32 %v335, 3.7796447
      %v368 = vmul.f32 %v336, 3.7796447
      %v369 = vmul.f32 %v337, 3.7796447
      %v370 = vmul.f32 %v338, 3.7796447
      %v371 = vmul.f32 %v339, 3.7796447
      %v372 = vmul.f32 %v340, 3.7796447
      %v373 = vmul.f32 %v341, 3.7796447
      %v374 = vmul.f32 %v342, 3.7796447
      %v375 = vmul.f32 %v343, 3.7796447
      %v376 = vmul.f32 %v344, 3.7796447
      %v377 = vmul.f32 %v120, %v345
      %v378 = vmul.f32 %v121, %v346
      %v379 = vmul.f32 %v122, %v347
      %v380 = vmul.f32 %v123, %v348
      %v381 = vmul.f32 %v124, %v349
      %v382 = vmul.f32 %v125, %v350
      %v383 = vmul.f32 %v126, %v351
      %v384 = vmul.f32 %v127, %v352
      %v385 = vmul.f32 %v128, %v353
      %v386 = vmul.f32 %v129, %v354
      %v387 = vmul.f32 %v130, %v355
      %v388 = vmul.f32 %v131, %v356
      %v389 = vmul.f32 %v132, %v357
      %v390 = vmul.f32 %v133, %v358
      %v391 = vmul.f32 %v134, %v359
      %v392 = vmul.f32 %v135, %v360
      %v393 = vmul.f32 %v136, %v361
      %v394 = vmul.f32 %v137, %v362
      %v395 = vmul.f32 %v138, %v363
      %v396 = vmul.f32 %v139, %v364
      %v397 = vmul.f32 %v140, %v365
      %v398 = vmul.f32 %v141, %v366
      %v399 = vmul.f32 %v142, %v367
      %v400 = vmul.f32 %v143, %v368
      %v401 = vmul.f32 %v144, %v369
      %v402 = vmul.f32 %v145, %v370
      %v403 = vmul.f32 %v146, %v371
      %v404 = vmul.f32 %v147, %v372
      %v405 = vmul.f32 %v148, %v373
      %v406 = vmul.f32 %v149, %v374
      %v407 = vmul.f32 %v150, %v375
      %v408 = vmul.f32 %v151, %v376
      %v409 = vpack.c.bf16 %v378, %v377
      %v410 = vpack.c.bf16 %v380, %v379
      %v411 = vpack.c.bf16 %v382, %v381
      %v412 = vpack.c.bf16 %v384, %v383
      %v413 = vpack.c.bf16 %v386, %v385
      %v414 = vpack.c.bf16 %v388, %v387
      %v415 = vpack.c.bf16 %v390, %v389
      %v416 = vpack.c.bf16 %v392, %v391
      %v417 = vpack.c.bf16 %v394, %v393
      %v418 = vpack.c.bf16 %v396, %v395
      %v419 = vpack.c.bf16 %v398, %v397
      %v420 = vpack.c.bf16 %v400, %v399
      %v421 = vpack.c.bf16 %v402, %v401
      %v422 = vpack.c.bf16 %v404, %v403
      %v423 = vpack.c.bf16 %v406, %v405
      %v424 = vpack.c.bf16 %v408, %v407
      %v441 = vunpack.c.l.b16 %v409
      %v442 = vunpack.c.h.b16 %v409
      %v443 = vunpack.c.l.b16 %v410
      %v444 = vunpack.c.h.b16 %v410
      %v445 = vunpack.c.l.b16 %v411
      %v446 = vunpack.c.h.b16 %v411
      %v447 = vunpack.c.l.b16 %v412
      %v448 = vunpack.c.h.b16 %v412
      %v449 = vunpack.c.l.b16 %v413
      %v450 = vunpack.c.h.b16 %v413
      %v451 = vunpack.c.l.b16 %v414
      %v452 = vunpack.c.h.b16 %v414
      %v453 = vunpack.c.l.b16 %v415
      %v454 = vunpack.c.h.b16 %v415
      %v455 = vunpack.c.l.b16 %v416
      %v456 = vunpack.c.h.b16 %v416
      %v457 = vunpack.c.l.b16 %v417
      %v458 = vunpack.c.h.b16 %v417
      %v459 = vunpack.c.l.b16 %v418
      %v460 = vunpack.c.h.b16 %v418
      %v461 = vunpack.c.l.b16 %v419
      %v462 = vunpack.c.h.b16 %v419
      %v463 = vunpack.c.l.b16 %v420
      %v464 = vunpack.c.h.b16 %v420
      %v465 = vunpack.c.l.b16 %v421
      %v466 = vunpack.c.h.b16 %v421
      %v467 = vunpack.c.l.b16 %v422
      %v468 = vunpack.c.h.b16 %v422
      %v469 = vunpack.c.l.b16 %v423
      %v470 = vunpack.c.h.b16 %v423
      %v471 = vunpack.c.l.b16 %v424
      %v472 = vunpack.c.h.b16 %v424
      %v473 = vpack.c.b16 %v441, %v441
      %v474 = vpack.c.b16 %v442, %v442
      %v475 = vpack.c.b16 %v443, %v443
      %v476 = vpack.c.b16 %v444, %v444
      %v477 = vpack.c.b16 %v445, %v445
      %v478 = vpack.c.b16 %v446, %v446
      %v479 = vpack.c.b16 %v447, %v447
      %v480 = vpack.c.b16 %v448, %v448
      %v481 = vpack.c.b16 %v449, %v449
      %v482 = vpack.c.b16 %v450, %v450
      %v483 = vpack.c.b16 %v451, %v451
      %v484 = vpack.c.b16 %v452, %v452
      %v485 = vpack.c.b16 %v453, %v453
      %v486 = vpack.c.b16 %v454, %v454
      %v487 = vpack.c.b16 %v455, %v455
      %v488 = vpack.c.b16 %v456, %v456
      %v489 = vpack.c.b16 %v457, %v457
      %v490 = vpack.c.b16 %v458, %v458
      %v491 = vpack.c.b16 %v459, %v459
      %v492 = vpack.c.b16 %v460, %v460
      %v493 = vpack.c.b16 %v461, %v461
      %v494 = vpack.c.b16 %v462, %v462
      %v495 = vpack.c.b16 %v463, %v463
      %v496 = vpack.c.b16 %v464, %v464
      %v497 = vpack.c.b16 %v465, %v465
      %v498 = vpack.c.b16 %v466, %v466
      %v499 = vpack.c.b16 %v467, %v467
      %v500 = vpack.c.b16 %v468, %v468
      %v501 = vpack.c.b16 %v469, %v469
      %v502 = vpack.c.b16 %v470, %v470
      %v503 = vpack.c.b16 %v471, %v471
      %v504 = vpack.c.b16 %v472, %v472
      %vm537 = vcmask 519168
      %538 = vst.msk [vmem:[%s118] sm:$0xf] %vm537, %v473
      %539 = vst.msk [vmem:[%s118 + $0x4] sm:$0xf] %vm537, %v474
      %540 = vst.msk [vmem:[%s118 + $0x8] sm:$0xf] %vm537, %v475
      %541 = vst.msk [vmem:[%s118 + $0xc] sm:$0xf] %vm537, %v476
      %542 = vst.msk [vmem:[%s118 + $0x10] sm:$0xf] %vm537, %v477
      %543 = vst.msk [vmem:[%s118 + $0x14] sm:$0xf] %vm537, %v478
      %544 = vst.msk [vmem:[%s118 + $0x18] sm:$0xf] %vm537, %v479
      %545 = vst.msk [vmem:[%s118 + $0x1c] sm:$0xf] %vm537, %v480
      %546 = vst.msk [vmem:[%s118 + $0x20] sm:$0xf] %vm537, %v481
      %547 = vst.msk [vmem:[%s118 + $0x24] sm:$0xf] %vm537, %v482
      %548 = vst.msk [vmem:[%s118 + $0x28] sm:$0xf] %vm537, %v483
      %549 = vst.msk [vmem:[%s118 + $0x2c] sm:$0xf] %vm537, %v484
      %550 = vst.msk [vmem:[%s118 + $0x30] sm:$0xf] %vm537, %v485
      %551 = vst.msk [vmem:[%s118 + $0x34] sm:$0xf] %vm537, %v486
      %552 = vst.msk [vmem:[%s118 + $0x38] sm:$0xf] %vm537, %v487
      %553 = vst.msk [vmem:[%s118 + $0x3c] sm:$0xf] %vm537, %v488
      %554 = vst.msk [vmem:[%s118 + $0x40] sm:$0xf] %vm537, %v489
      %555 = vst.msk [vmem:[%s118 + $0x44] sm:$0xf] %vm537, %v490
      %556 = vst.msk [vmem:[%s118 + $0x48] sm:$0xf] %vm537, %v491
      %557 = vst.msk [vmem:[%s118 + $0x4c] sm:$0xf] %vm537, %v492
      %558 = vst.msk [vmem:[%s118 + $0x50] sm:$0xf] %vm537, %v493
      %559 = vst.msk [vmem:[%s118 + $0x54] sm:$0xf] %vm537, %v494
      %560 = vst.msk [vmem:[%s118 + $0x58] sm:$0xf] %vm537, %v495
      %561 = vst.msk [vmem:[%s118 + $0x5c] sm:$0xf] %vm537, %v496
      %562 = vst.msk [vmem:[%s118 + $0x60] sm:$0xf] %vm537, %v497
      %563 = vst.msk [vmem:[%s118 + $0x64] sm:$0xf] %vm537, %v498
      %564 = vst.msk [vmem:[%s118 + $0x68] sm:$0xf] %vm537, %v499
      %565 = vst.msk [vmem:[%s118 + $0x6c] sm:$0xf] %vm537, %v500
      %566 = vst.msk [vmem:[%s118 + $0x70] sm:$0xf] %vm537, %v501
      %567 = vst.msk [vmem:[%s118 + $0x74] sm:$0xf] %vm537, %v502
      %568 = vst.msk [vmem:[%s118 + $0x78] sm:$0xf] %vm537, %v503
      %569 = vst.msk [vmem:[%s118 + $0x7c] sm:$0xf] %vm537, %v504
      %s570 = smul.u32 32, %s12
      %p571 = scmp.lt.s32.totalorder %s570, 63
      %s572 = scalar_select %p571, %s570, 63
      %s573 = smul.addr %s572, 4
      %s574 = scalar_lea.vmem %s1, %s573
      // Predicated region
      $region25: #{tpu_custom_call.1} parent=23 // pred_check
        %p575 = pneg %p56
      $region26: #{tpu_custom_call.1} parent=23 // pred_check_branch
        %577 = sbr.rel (%p575) target = $region28
      $region27: #{tpu_custom_call.1} parent=23 // pred_region
        %s578 = smul.u32 32, %s12
      $region28: #{tpu_custom_call.1} parent=23 // pred_fallthru
        _
    $region24: #{tpu_custom_call.1} parent=5 // pred_fallthru
      _
    %p579 = scmp.le.s32.totalorder 2, %s7
    // Predicated region
    $region29: #{tpu_custom_call.1} parent=5 // pred_check
      %p580 = pneg %p579
    $region30: #{tpu_custom_call.1} parent=5 // pred_check_branch
      %582 = sbr.rel (%p580) target = $region32
    $region31: #{tpu_custom_call.1} parent=5 // pred_region
      %s583 = ssub.s32 %s7, 2
      // Predicated region
      $region33: #{tpu_custom_call.1} parent=31 // pred_check
        %p584 = pneg %p62
      $region34: #{tpu_custom_call.1} parent=31 // pred_check_branch
        %586 = sbr.rel (%p584) target = $region36
      $region35: #{tpu_custom_call.1} parent=31 // pred_region
        %s587 = smul.u32 32, %s13
        %p588 = scmp.lt.s32.totalorder %s587, 63
        %s589 = scalar_select %p588, %s587, 63
        %s590 = smul.addr %s589, 4
        %s591 = scalar_lea.vmem %s1, %s590
      $region36: #{tpu_custom_call.1} parent=31 // pred_fallthru
        _
    $region32: #{tpu_custom_call.1} parent=5 // pred_fallthru
      _
  $region6: #{tpu_custom_call.1} parent=0 // loop_footer
    %s11 = sadd.s32 1, %s7
  $region7: #{tpu_custom_call.1} parent=0 // loop_footer_branch
    %6 = sbr.rel target = $region3
  $region8: #{tpu_custom_call.1} parent=0 // loop_exit
    _

</llo_original>
